<compile_context>
chip_gen: v7x
topology: tpu7x:2x2x1
jax: 0.10.0
libtpu: 0.0.40
codegen_flags: <defaults>
</compile_context>

<pallas_src>
import functools

import jax
import jax.numpy as jnp
from jax.experimental import pallas as pl
from jax.experimental.pallas import tpu as pltpu

TEMPERATURE = 2.0
ALPHA_CE = 0.5


def _round_up(x, m):
    return ((x + m - 1) // m) * m


def _kd_loss_kernel(s_ref, t_ref, tgt_ref, out_ref, *, total_b):
    # s_ref, t_ref: (TB, C) logit tiles in VMEM; tgt_ref: (TB, 1) int32 tile.
    # out_ref: (1, 1) f32 scalar in SMEM, resident across the whole grid.
    g = pl.program_id(0)

    @pl.when(g == 0)
    def _():
        out_ref[0, 0] = 0.0

    s = s_ref[...].astype(jnp.float32)
    t = t_ref[...].astype(jnp.float32)
    tb, c = s.shape
    temp = float(TEMPERATURE)
    inv_t = 1.0 / temp
    inv_b = 1.0 / float(total_b)

    # Row-validity mask (the last tile may be padded past the real batch).
    row_ids = g * tb + jax.lax.broadcasted_iota(jnp.int32, (tb, 1), 0)
    valid = row_ids < total_b

    # ---- teacher: softmax statistics at temperature (exp pass #1) ----
    t_scaled = t * inv_t
    t_max = jnp.max(t_scaled, axis=-1, keepdims=True)
    t_shift = t_scaled - t_max
    t_exp = jnp.exp(t_shift)
    t_sum = jnp.sum(t_exp, axis=-1, keepdims=True)

    # ---- student: log-sum-exp at temperature (exp pass #2) ----
    s_scaled = s * inv_t
    s_max = jnp.max(s_scaled, axis=-1, keepdims=True)
    e_s = jnp.exp(s_scaled - s_max)
    s_lse_t = jnp.log(jnp.sum(e_s, axis=-1, keepdims=True)) + s_max  # lse(s/T)

    # ---- per-row KD:
    #   sum_c p_t*(log p_t - log q_s)
    #     = sum_c t_exp*(t_shift - s_scaled) / t_sum  - log(t_sum) + lse(s/T)
    # (uses sum_c p_t == 1; avoids materialising p_t / log_p / log_q blocks)
    kd_num = jnp.sum(t_exp * (t_shift - s_scaled), axis=-1, keepdims=True)
    kd_row = kd_num / t_sum - jnp.log(t_sum) + s_lse_t

    # ---- per-row CE on raw student logits: lse(s) - s[target] ----
    if temp == 1.0:
        s_lse_raw = s_lse_t
    elif temp == 2.0:
        # exp(s - T*s_max) = exp(s/T - s_max)**2 = e_s * e_s  (no 3rd exp pass)
        s_lse_raw = jnp.log(jnp.sum(e_s * e_s, axis=-1, keepdims=True)) + temp * s_max
    else:
        s_raw_max = temp * s_max  # T > 0 -> max(s) = T * max(s/T)
        s_lse_raw = (jnp.log(jnp.sum(jnp.exp(s - s_raw_max), axis=-1, keepdims=True))
                     + s_raw_max)

    classes = jax.lax.broadcasted_iota(jnp.int32, (tb, c), 1)
    one_hot = (classes == tgt_ref[...]).astype(jnp.float32)
    s_tgt = jnp.sum(one_hot * s, axis=-1, keepdims=True)
    ce_row = s_lse_raw - s_tgt

    kd_sum = jnp.sum(jnp.where(valid, kd_row, 0.0))
    ce_sum = jnp.sum(jnp.where(valid, ce_row, 0.0))

    partial = ((1.0 - ALPHA_CE) * ce_sum
               + ALPHA_CE * (temp * temp) * kd_sum) * inv_b
    out_ref[0, 0] += partial


def kd_loss(s_logit, t_logit, target, *, block_b=512):
    """Knowledge-distillation loss (scalar). s_logit/t_logit: (B, C), target: (B,) int."""
    B, C = s_logit.shape
    tb = _round_up(min(block_b, _round_up(B, 8)), 8)
    grid = (pl.cdiv(B, tb),)
    tgt = target.reshape(B, 1).astype(jnp.int32)

    itemsize = jnp.dtype(s_logit.dtype).itemsize
    cost = pl.CostEstimate(
        flops=int(14 * B * C),
        transcendentals=int(2 * B * C + 4 * B),
        bytes_accessed=int(2 * B * C * itemsize + B * 4 + 4),
    )

    out = pl.pallas_call(
        functools.partial(_kd_loss_kernel, total_b=B),
        out_shape=jax.ShapeDtypeStruct((1, 1), jnp.float32),
        grid=grid,
        in_specs=[
            pl.BlockSpec((tb, C), lambda g: (g, 0)),
            pl.BlockSpec((tb, C), lambda g: (g, 0)),
            pl.BlockSpec((tb, 1), lambda g: (g, 0)),
        ],
        out_specs=pl.BlockSpec(memory_space=pltpu.MemorySpace.SMEM),
        compiler_params=pltpu.CompilerParams(
            dimension_semantics=("arbitrary",),
        ),
        cost_estimate=cost,
    )(s_logit, t_logit, tgt)
    return out[0, 0]


def _reference(s_logit, t_logit, target):
    s = s_logit.astype(jnp.float32)
    t = t_logit.astype(jnp.float32)
    B = s.shape[0]
    log_q = jax.nn.log_softmax(s / TEMPERATURE, axis=-1)
    p = jax.nn.softmax(t / TEMPERATURE, axis=-1)
    log_p = jax.nn.log_softmax(t / TEMPERATURE, axis=-1)
    loss_kd = jnp.sum(p * (log_p - log_q)) / B * TEMPERATURE ** 2
    log_sm = jax.nn.log_softmax(s, axis=-1)
    loss_og = -jnp.mean(jnp.take_along_axis(log_sm, target[:, None], axis=-1))
    return (1.0 - ALPHA_CE) * loss_og + ALPHA_CE * loss_kd


if __name__ == "__main__":
    key = jax.random.PRNGKey(0)
    k_s, k_t, k_y = jax.random.split(key, 3)
    B, C = 24, 128
    s_logit = jax.random.normal(k_s, (B, C), dtype=jnp.float32)
    t_logit = jax.random.normal(k_t, (B, C), dtype=jnp.float32)
    target = jax.random.randint(k_y, (B,), 0, C, dtype=jnp.int32)

    ref = _reference(s_logit, t_logit, target)

    # Single-tile path (grid of 1).
    loss1 = kd_loss(s_logit, t_logit, target)
    # Multi-tile path with a partial (masked) last tile: grid of 2, TB=16.
    loss2 = kd_loss(s_logit, t_logit, target, block_b=16)
    jax.block_until_ready((loss1, loss2))

    assert jnp.allclose(loss1, ref, atol=1e-5, rtol=1e-5), (loss1, ref)
    assert jnp.allclose(loss2, ref, atol=1e-5, rtol=1e-5), (loss2, ref)
    print("KERNEL_OK")
</pallas_src>

<mosaic_0001>
module attributes {stable_mosaic.version = 11 : i64} {
  func.func @_kd_loss_kernel(%arg0: i32, %arg1: memref<24x128xf32, #tpu.memory_space<vmem>>, %arg2: memref<24x128xf32, #tpu.memory_space<vmem>>, %arg3: memref<24x1xi32, #tpu.memory_space<vmem>>, %arg4: memref<1x1xf32, #tpu.memory_space<smem>>) attributes {dimension_semantics = [#tpu.dimension_semantics<arbitrary>], iteration_bounds = array<i64: 1>, scalar_prefetch = 0 : i64, scratch_operands = 0 : i64, tpu.core_type = #tpu.core_type<tc>, window_params = [{transform_indices = @transform_0, window_bounds = array<i64: 24, 128>}, {transform_indices = @transform_1, window_bounds = array<i64: 24, 128>}, {transform_indices = @transform_2, window_bounds = array<i64: 24, 1>}, {transform_indices = @transform_3, window_bounds = array<i64: 1, 1>}]} {
    %c0_i32 = arith.constant 0 : i32
    %0 = arith.cmpi eq, %arg0, %c0_i32 : i32
    %1 = arith.extui %0 : i1 to i32
    %c0_i32_0 = arith.constant 0 : i32
    %2 = arith.cmpi ne, %1, %c0_i32_0 : i32
    scf.if %2 {
      %cst_27 = arith.constant 0.000000e+00 : f32
      %c0_28 = arith.constant 0 : index
      %c0_29 = arith.constant 0 : index
      %75 = memref.load %arg4[%c0_28, %c0_29] : memref<1x1xf32, #tpu.memory_space<smem>>
      memref.store %cst_27, %arg4[%c0_28, %c0_29] : memref<1x1xf32, #tpu.memory_space<smem>>
    } else {
    }
    %c0 = arith.constant 0 : index
    %c0_1 = arith.constant 0 : index
    %3 = vector.load %arg1[%c0, %c0_1] : memref<24x128xf32, #tpu.memory_space<vmem>>, vector<24x128xf32>
    %c0_2 = arith.constant 0 : index
    %c0_3 = arith.constant 0 : index
    %4 = vector.load %arg2[%c0_2, %c0_3] : memref<24x128xf32, #tpu.memory_space<vmem>>, vector<24x128xf32>
    %c24_i32 = arith.constant 24 : i32
    %5 = arith.muli %arg0, %c24_i32 : i32
    %6 = tpu.iota {dimensions = array<i32: 0>} : vector<24x1xi32>
    %7 = vector.broadcast %5 : i32 to vector<24x1xi32>
    %8 = arith.addi %7, %6 : vector<24x1xi32>
    %c24_i32_4 = arith.constant 24 : i32
    %9 = vector.broadcast %c24_i32_4 : i32 to vector<24x1xi32>
    %10 = arith.cmpi slt, %8, %9 : vector<24x1xi32>
    %cst = arith.constant 5.000000e-01 : f32
    %11 = vector.broadcast %cst : f32 to vector<24x128xf32>
    %12 = arith.mulf %4, %11 : vector<24x128xf32>
    %cst_5 = arith.constant dense<0xFF800000> : vector<24xf32>
    %13 = vector.multi_reduction <maximumf>, %12, %cst_5 [1] : vector<24x128xf32> to vector<24xf32>
    %14 = vector.shape_cast %13 : vector<24xf32> to vector<24x1xf32>
    %15 = vector.broadcast %14 : vector<24x1xf32> to vector<24x128xf32>
    %16 = arith.subf %12, %15 : vector<24x128xf32>
    %17 = math.exp %16 : vector<24x128xf32>
    %cst_6 = arith.constant dense<0.000000e+00> : vector<24xf32>
    %18 = vector.multi_reduction <add>, %17, %cst_6 [1] : vector<24x128xf32> to vector<24xf32>
    %19 = vector.shape_cast %18 : vector<24xf32> to vector<24x1xf32>
    %cst_7 = arith.constant 5.000000e-01 : f32
    %20 = vector.broadcast %cst_7 : f32 to vector<24x128xf32>
    %21 = arith.mulf %3, %20 : vector<24x128xf32>
    %cst_8 = arith.constant dense<0xFF800000> : vector<24xf32>
    %22 = vector.multi_reduction <maximumf>, %21, %cst_8 [1] : vector<24x128xf32> to vector<24xf32>
    %23 = vector.shape_cast %22 : vector<24xf32> to vector<24x1xf32>
    %24 = vector.broadcast %23 : vector<24x1xf32> to vector<24x128xf32>
    %25 = arith.subf %21, %24 : vector<24x128xf32>
    %26 = math.exp %25 : vector<24x128xf32>
    %cst_9 = arith.constant dense<0.000000e+00> : vector<24xf32>
    %27 = vector.multi_reduction <add>, %26, %cst_9 [1] : vector<24x128xf32> to vector<24xf32>
    %28 = vector.shape_cast %27 : vector<24xf32> to vector<24x1xf32>
    %29 = math.log %28 : vector<24x1xf32>
    %30 = arith.addf %29, %23 : vector<24x1xf32>
    %31 = arith.subf %16, %21 : vector<24x128xf32>
    %32 = arith.mulf %17, %31 : vector<24x128xf32>
    %cst_10 = arith.constant dense<0.000000e+00> : vector<24xf32>
    %33 = vector.multi_reduction <add>, %32, %cst_10 [1] : vector<24x128xf32> to vector<24xf32>
    %34 = vector.shape_cast %33 : vector<24xf32> to vector<24x1xf32>
    %35 = arith.divf %34, %19 : vector<24x1xf32>
    %36 = math.log %19 : vector<24x1xf32>
    %37 = arith.subf %35, %36 : vector<24x1xf32>
    %38 = arith.addf %37, %30 : vector<24x1xf32>
    %39 = arith.mulf %26, %26 : vector<24x128xf32>
    %cst_11 = arith.constant dense<0.000000e+00> : vector<24xf32>
    %40 = vector.multi_reduction <add>, %39, %cst_11 [1] : vector<24x128xf32> to vector<24xf32>
    %41 = vector.shape_cast %40 : vector<24xf32> to vector<24x1xf32>
    %42 = math.log %41 : vector<24x1xf32>
    %cst_12 = arith.constant 2.000000e+00 : f32
    %43 = vector.broadcast %cst_12 : f32 to vector<24x1xf32>
    %44 = arith.mulf %43, %23 : vector<24x1xf32>
    %45 = arith.addf %42, %44 : vector<24x1xf32>
    %46 = tpu.iota {dimensions = array<i32: 1>} : vector<24x128xi32>
    %c0_13 = arith.constant 0 : index
    %c0_14 = arith.constant 0 : index
    %47 = vector.load %arg3[%c0_13, %c0_14] : memref<24x1xi32, #tpu.memory_space<vmem>>, vector<24x1xi32>
    %48 = vector.broadcast %47 : vector<24x1xi32> to vector<24x128xi32>
    %49 = arith.cmpi eq, %46, %48 : vector<24x128xi32>
    %50 = arith.extui %49 : vector<24x128xi1> to vector<24x128xi32>
    %51 = arith.sitofp %50 : vector<24x128xi32> to vector<24x128xf32>
    %52 = arith.mulf %51, %3 : vector<24x128xf32>
    %cst_15 = arith.constant dense<0.000000e+00> : vector<24xf32>
    %53 = vector.multi_reduction <add>, %52, %cst_15 [1] : vector<24x128xf32> to vector<24xf32>
    %54 = vector.shape_cast %53 : vector<24xf32> to vector<24x1xf32>
    %55 = arith.subf %45, %54 : vector<24x1xf32>
    %cst_16 = arith.constant 0.000000e+00 : f32
    %56 = vector.broadcast %cst_16 : f32 to vector<24x1xf32>
    %57 = arith.select %10, %38, %56 : vector<24x1xi1>, vector<24x1xf32>
    %58 = vector.shape_cast %57 : vector<24x1xf32> to vector<1x24x1xf32>
    %cst_17 = arith.constant dense<0.000000e+00> : vector<1xf32>
    %59 = vector.multi_reduction <add>, %58, %cst_17 [1, 2] : vector<1x24x1xf32> to vector<1xf32>
    %60 = vector.shape_cast %59 : vector<1xf32> to vector<1x1x1xf32>
    %61 = vector.extract %60[0, 0, 0] : f32 from vector<1x1x1xf32>
    %cst_18 = arith.constant 0.000000e+00 : f32
    %62 = vector.broadcast %cst_18 : f32 to vector<24x1xf32>
    %63 = arith.select %10, %55, %62 : vector<24x1xi1>, vector<24x1xf32>
    %64 = vector.shape_cast %63 : vector<24x1xf32> to vector<1x24x1xf32>
    %cst_19 = arith.constant dense<0.000000e+00> : vector<1xf32>
    %65 = vector.multi_reduction <add>, %64, %cst_19 [1, 2] : vector<1x24x1xf32> to vector<1xf32>
    %66 = vector.shape_cast %65 : vector<1xf32> to vector<1x1x1xf32>
    %67 = vector.extract %66[0, 0, 0] : f32 from vector<1x1x1xf32>
    %cst_20 = arith.constant 5.000000e-01 : f32
    %68 = arith.mulf %cst_20, %67 : f32
    %cst_21 = arith.constant 2.000000e+00 : f32
    %69 = arith.mulf %cst_21, %61 : f32
    %70 = arith.addf %68, %69 : f32
    %cst_22 = arith.constant 0.0416666679 : f32
    %71 = arith.mulf %70, %cst_22 : f32
    %c0_23 = arith.constant 0 : index
    %c0_24 = arith.constant 0 : index
    %72 = memref.load %arg4[%c0_23, %c0_24] : memref<1x1xf32, #tpu.memory_space<smem>>
    %73 = arith.addf %72, %71 : f32
    %c0_25 = arith.constant 0 : index
    %c0_26 = arith.constant 0 : index
    %74 = memref.load %arg4[%c0_25, %c0_26] : memref<1x1xf32, #tpu.memory_space<smem>>
    memref.store %73, %arg4[%c0_25, %c0_26] : memref<1x1xf32, #tpu.memory_space<smem>>
    return
  }
  func.func @transform_0(%arg0: i32) -> (i32, i32) {
    %c0_i32 = arith.constant 0 : i32
    %c0_i32_0 = arith.constant 0 : i32
    return %arg0, %c0_i32 : i32, i32
  }
  func.func @transform_1(%arg0: i32) -> (i32, i32) {
    %c0_i32 = arith.constant 0 : i32
    %c0_i32_0 = arith.constant 0 : i32
    return %arg0, %c0_i32 : i32, i32
  }
  func.func @transform_2(%arg0: i32) -> (i32, i32) {
    %c0_i32 = arith.constant 0 : i32
    %c0_i32_0 = arith.constant 0 : i32
    return %arg0, %c0_i32 : i32, i32
  }
  func.func @transform_3(%arg0: i32) -> (i32, i32) {
    %c0_i32 = arith.constant 0 : i32
    %c0_i32_0 = arith.constant 0 : i32
    %c0_i32_1 = arith.constant 0 : i32
    return %c0_i32, %c0_i32_0 : i32, i32
  }
}

</mosaic_0001>

<llo_original>
// kernel: tpu_custom_call.1
$region0: #{tpu_custom_call.1}
  #allocation0 [shape = 'u32[]', space=smem, size = 0x4, offset = 0x4, fixed_abs, tag = 'smem constant byte address 0x4 - core index']
  #allocation1 [shape = 'u32[144,128]{1,0:T(1,128)}', space=vmem, size = 0x12000, scoped, tag = 'internal scratch']
  %s0 = inlined_call_operand.vmem [shape: f32[24,128], index: 0, kind: input, shape index: {}]
  %s1 = inlined_call_operand.hbm [shape: f32[24,128], index: 1, kind: input, shape index: {}]
  %s2 = inlined_call_operand.vmem [shape: s32[24,1], index: 2, kind: input, shape index: {}]
  %s3 = inlined_call_operand.hbm [shape: f32[1,1], index: 3, kind: output, shape index: {}]
  %s4 = sld [smem:[#allocation0]]
  $region30: #{tpu_custom_call.1} parent=0
    _
  %s6 = ssub.s32 1, %s4
  %s7 = scalar_select 0, %s6, %s4
  $region1: #{tpu_custom_call.1} parent=0
    #allocation2 [shape = 'u8[12288]{0}', space=vmem, size = 0x3000, scoped, tag = 'input window, operand 1, single buffered']
    #allocation3 [shape = 's32[1]{0}', space=sflag, size = 0x4, scoped, tag = 'scoped memory for tpu_custom_call.1']
    #allocation4 [shape = 's32[1]{0}', space=sflag, size = 0x4, scoped, tag = 'scoped memory for tpu_custom_call.1']
    #allocation5 [shape = 'u8[512]{0}', space=smem, size = 0x200, scoped, tag = 'output window, operand 0, single buffered']
    %8 = vsyncpa [#allocation3], 0
    %9 = vsyncpa [#allocation4], 0
    // Predicated region
    $region2: #{tpu_custom_call.1} parent=1 // pred_check
      _
    $region3: #{tpu_custom_call.1} parent=1 // pred_check_branch
      %11 = sbr.rel (0) target = $region5
    $region4: #{tpu_custom_call.1} parent=1 // pred_region
      _
    $region5: #{tpu_custom_call.1} parent=1 // pred_fallthru
      _
    // Predicated region
    $region6: #{tpu_custom_call.1} parent=1 // pred_check
      _
    $region7: #{tpu_custom_call.1} parent=1 // pred_check_branch
      %13 = sbr.rel (0) target = $region9
    $region8: #{tpu_custom_call.1} parent=1 // pred_region
      %s15 = ssub.s32 384, 384
      %16 = vsyncadd [#allocation3], %s15
      %s17 = sshll.u32 [#allocation2], 4
      %s18 = int_to_ptr.vmem [resolvable:$true] %s17
      %23 = dma.hbm_to_vmem [thread:$0]  %s1, 384, %s18, [#allocation3], 128, 128, 8
    $region9: #{tpu_custom_call.1} parent=1 // pred_fallthru
      _
    // Predicated region
    $region10: #{tpu_custom_call.1} parent=1 // pred_check
      _
    $region11: #{tpu_custom_call.1} parent=1 // pred_check_branch
      %25 = sbr.rel (0) target = $region13
    $region12: #{tpu_custom_call.1} parent=1 // pred_region
      _
    $region13: #{tpu_custom_call.1} parent=1 // pred_fallthru
      _
    // Predicated region
    $region14: #{tpu_custom_call.1} parent=1 // pred_check
      _
    $region15: #{tpu_custom_call.1} parent=1 // pred_check_branch
      %27 = sbr.rel (0) target = $region17
    $region16: #{tpu_custom_call.1} parent=1 // pred_region
      %28 = dma.done [#allocation3], 384
    $region17: #{tpu_custom_call.1} parent=1 // pred_fallthru
      _
    %p29 = scmp.eq.s32.totalorder 0, 0
    // Predicated region
    $region18: #{tpu_custom_call.1} parent=1 // pred_check
      %p30 = pneg %p29
    $region19: #{tpu_custom_call.1} parent=1 // pred_check_branch
      %32 = sbr.rel (%p30) target = $region21
    $region20: #{tpu_custom_call.1} parent=1 // pred_region
      %s33 = scalar_lea.smem [#allocation5], 0
      %34 = sst [smem:[%s33]] 0.0
    $region21: #{tpu_custom_call.1} parent=1 // pred_fallthru
      _
    %v35 = vld [vmem:[%s0] sm:$0xff]
    %v36 = vld [vmem:[%s0 + $0x8] sm:$0xff]
    %v37 = vld [vmem:[%s0 + $0x10] sm:$0xff]
    %v38 = vld [vmem:[#allocation2] sm:$0xff]
    %v39 = vld [vmem:[#allocation2 + $0x8] sm:$0xff]
    %v40 = vld [vmem:[#allocation2 + $0x10] sm:$0xff]
    %s41 = smul.u32 0, 24
    %v42 = vlaneseq
    %v43 = vshrl.u32 %v42, 7
    %v44 = vadd.s32 %v43, 8
    %v45 = vadd.s32 %v43, 16
    %v46 = vstv %s41
    %v47 = vadd.s32 %v46, %v43
    %v48 = vadd.s32 %v46, %v44
    %v49 = vadd.s32 %v46, %v45
    %vm50 = vcmp.lt.s32.totalorder %v47, 24
    %vm51 = vcmp.lt.s32.totalorder %v48, 24
    %vm52 = vcmp.lt.s32.totalorder %v49, 24
    %v53 = vmul.f32 %v38, 0.5
    %v54 = vmul.f32 %v39, 0.5
    %v55 = vmul.f32 %v40, 0.5
    %56 = vmax.xlane.f32.xlu0 %v53
    %v57 = vpop.xlane.xlu0 %56
    %58 = vmax.xlane.f32.xlu0 %v54
    %v59 = vpop.xlane.xlu0 %58
    %60 = vmax.xlane.f32.xlu0 %v55
    %v61 = vpop.xlane.xlu0 %60
    %v62 = vsub.f32 %v53, %v57
    %v63 = vsub.f32 %v54, %v59
    %v64 = vsub.f32 %v55, %v61
    %v65 = vmul.f32 %v62, 1.442695
    %v66 = vpow.pop %v65
    %v67 = vmul.f32 %v63, 1.442695
    %v68 = vpow.pop %v67
    %v69 = vmul.f32 %v64, 1.442695
    %v70 = vpow.pop %v69
    %71 = vadd.xlane.f32.xlu0 %v66
    %v72 = vpop.xlane.xlu0 %71
    %73 = vadd.xlane.f32.xlu0 %v68
    %v74 = vpop.xlane.xlu0 %73
    %75 = vadd.xlane.f32.xlu0 %v70
    %v76 = vpop.xlane.xlu0 %75
    %v77 = vmul.f32 %v35, 0.5
    %v78 = vmul.f32 %v36, 0.5
    %v79 = vmul.f32 %v37, 0.5
    %80 = vmax.xlane.f32.xlu0 %v77
    %v81 = vpop.xlane.xlu0 %80
    %82 = vmax.xlane.f32.xlu0 %v78
    %v83 = vpop.xlane.xlu0 %82
    %84 = vmax.xlane.f32.xlu0 %v79
    %v85 = vpop.xlane.xlu0 %84
    %v86 = vsub.f32 %v77, %v81
    %v87 = vsub.f32 %v78, %v83
    %v88 = vsub.f32 %v79, %v85
    %v89 = vmul.f32 %v86, 1.442695
    %v90 = vpow.pop %v89
    %v91 = vmul.f32 %v87, 1.442695
    %v92 = vpow.pop %v91
    %v93 = vmul.f32 %v88, 1.442695
    %v94 = vpow.pop %v93
    %95 = vadd.xlane.f32.xlu0 %v90
    %v96 = vpop.xlane.xlu0 %95
    %97 = vadd.xlane.f32.xlu0 %v92
    %v98 = vpop.xlane.xlu0 %97
    %99 = vadd.xlane.f32.xlu0 %v94
    %v100 = vpop.xlane.xlu0 %99
    %v101 = vlog2.pop %v96
    %v102 = vmul.f32 %v101, 0.6931472
    %v103 = vlog2.pop %v98
    %v104 = vmul.f32 %v103, 0.6931472
    %v105 = vlog2.pop %v100
    %v106 = vmul.f32 %v105, 0.6931472
    %v107 = vadd.f32 %v102, %v81
    %v108 = vadd.f32 %v104, %v83
    %v109 = vadd.f32 %v106, %v85
    %v110 = vsub.f32 %v62, %v77
    %v111 = vsub.f32 %v63, %v78
    %v112 = vsub.f32 %v64, %v79
    %v113 = vmul.f32 %v66, %v110
    %v114 = vmul.f32 %v68, %v111
    %v115 = vmul.f32 %v70, %v112
    %116 = vadd.xlane.f32.xlu0 %v113
    %v117 = vpop.xlane.xlu0 %116
    %118 = vadd.xlane.f32.xlu0 %v114
    %v119 = vpop.xlane.xlu0 %118
    %120 = vadd.xlane.f32.xlu0 %v115
    %v121 = vpop.xlane.xlu0 %120
    %v122 = vrcp.pop %v72
    %v123 = vmul.f32 %v117, %v122
    %v124 = vrcp.pop %v74
    %v125 = vmul.f32 %v119, %v124
    %v126 = vrcp.pop %v76
    %v127 = vmul.f32 %v121, %v126
    %v128 = vlog2.pop %v72
    %v129 = vmul.f32 %v128, 0.6931472
    %v130 = vlog2.pop %v74
    %v131 = vmul.f32 %v130, 0.6931472
    %v132 = vlog2.pop %v76
    %v133 = vmul.f32 %v132, 0.6931472
    %v134 = vsub.f32 %v123, %v129
    %v135 = vsub.f32 %v125, %v131
    %v136 = vsub.f32 %v127, %v133
    %v137 = vadd.f32 %v134, %v107
    %v138 = vadd.f32 %v135, %v108
    %v139 = vadd.f32 %v136, %v109
    %v140 = vmul.f32 %v90, %v90
    %v141 = vmul.f32 %v92, %v92
    %v142 = vmul.f32 %v94, %v94
    %143 = vadd.xlane.f32.xlu0 %v140
    %v144 = vpop.xlane.xlu0 %143
    %145 = vadd.xlane.f32.xlu0 %v141
    %v146 = vpop.xlane.xlu0 %145
    %147 = vadd.xlane.f32.xlu0 %v142
    %v148 = vpop.xlane.xlu0 %147
    %v149 = vlog2.pop %v144
    %v150 = vmul.f32 %v149, 0.6931472
    %v151 = vlog2.pop %v146
    %v152 = vmul.f32 %v151, 0.6931472
    %v153 = vlog2.pop %v148
    %v154 = vmul.f32 %v153, 0.6931472
    %v155 = vmul.f32 %v81, 2.0
    %v156 = vmul.f32 %v83, 2.0
    %v157 = vmul.f32 %v85, 2.0
    %v158 = vadd.f32 %v150, %v155
    %v159 = vadd.f32 %v152, %v156
    %v160 = vadd.f32 %v154, %v157
    %v161 = vlaneseq
    %v162 = vand.u32 %v161, 127
    %v163 = vld [vmem:[%s2] sm:$0xff]
    %v164 = vld [vmem:[%s2 + $0x8] sm:$0xff]
    %v165 = vld [vmem:[%s2 + $0x10] sm:$0xff]
    %166 = vset.pattern.permute.xlu0 0
    %167 = vperm.xlu0 %166, %v163
    %v168 = vpop.permute.xlu0 %167
    %169 = vset.pattern.permute.xlu0 0
    %170 = vperm.xlu0 %169, %v164
    %v171 = vpop.permute.xlu0 %170
    %172 = vset.pattern.permute.xlu0 0
    %173 = vperm.xlu0 %172, %v165
    %v174 = vpop.permute.xlu0 %173
    %vm175 = vcmp.eq.s32.totalorder %v162, %v168
    %vm176 = vcmp.eq.s32.totalorder %v162, %v171
    %vm177 = vcmp.eq.s32.totalorder %v162, %v174
    %v178 = vsel %vm175, 1, 0
    %v179 = vsel %vm176, 1, 0
    %v180 = vsel %vm177, 1, 0
    %v181 = vcvt.s32.f32 %v178
    %v182 = vcvt.s32.f32 %v179
    %v183 = vcvt.s32.f32 %v180
    %v184 = vmul.f32 %v181, %v35
    %v185 = vmul.f32 %v182, %v36
    %v186 = vmul.f32 %v183, %v37
    %187 = vadd.xlane.f32.xlu0 %v184
    %v188 = vpop.xlane.xlu0 %187
    %189 = vadd.xlane.f32.xlu0 %v185
    %v190 = vpop.xlane.xlu0 %189
    %191 = vadd.xlane.f32.xlu0 %v186
    %v192 = vpop.xlane.xlu0 %191
    %v193 = vsub.f32 %v158, %v188
    %v194 = vsub.f32 %v159, %v190
    %v195 = vsub.f32 %v160, %v192
    %v196 = vsel %vm50, %v137, 0.0
    %v197 = vsel %vm51, %v138, 0.0
    %v198 = vsel %vm52, %v139, 0.0
    %vm199 = vcmask 7168
    %v200 = vsel %vm199, %v196, 0.0
    %v201 = vsel %vm199, %v197, 0.0
    %v202 = vadd.f32 %v200, %v201
    %v203 = vsel %vm199, %v198, 0.0
    %v204 = vadd.f32 %v202, %v203
    %205 = vadd.xlane.f32.xlu0 %v204
    %v206 = vpop.xlane.xlu0 %205
    %v207 = vrot.slane %v206, 4
    %v208 = vadd.f32 %v206, %v207
    %v209 = vrot.slane %v208, 2
    %v210 = vadd.f32 %v208, %v209
    %v211 = vrot.slane %v210, 1
    %v212 = vadd.f32 %v210, %v211
    %s213 = vtos %v212
    %v214 = vsel %vm50, %v193, 0.0
    %v215 = vsel %vm51, %v194, 0.0
    %v216 = vsel %vm52, %v195, 0.0
    %v217 = vsel %vm199, %v214, 0.0
    %v218 = vsel %vm199, %v215, 0.0
    %v219 = vadd.f32 %v217, %v218
    %v220 = vsel %vm199, %v216, 0.0
    %v221 = vadd.f32 %v219, %v220
    %222 = vadd.xlane.f32.xlu0 %v221
    %v223 = vpop.xlane.xlu0 %222
    %v224 = vrot.slane %v223, 4
    %v225 = vadd.f32 %v223, %v224
    %v226 = vrot.slane %v225, 2
    %v227 = vadd.f32 %v225, %v226
    %v228 = vrot.slane %v227, 1
    %v229 = vadd.f32 %v227, %v228
    %s230 = vtos %v229
    %s231 = smul.f32 %s230, 0.5
    %s232 = smul.f32 %s213, 2.0
    %s233 = sadd.f32 %s231, %s232
    %s234 = smul.f32 %s233, 0.041666668
    %s235 = sld [smem:[#allocation5]]
    %s236 = sadd.f32 %s235, %s234
    %s237 = scalar_lea.smem [#allocation5], 0
    %238 = sst [smem:[%s237]] %s236
    // Predicated region
    $region22: #{tpu_custom_call.1} parent=1 // pred_check
      _
    $region23: #{tpu_custom_call.1} parent=1 // pred_check_branch
      %240 = sbr.rel (0) target = $region25
    $region24: #{tpu_custom_call.1} parent=1 // pred_region
      %s242 = ssub.s32 16, 16
      %243 = vsyncadd [#allocation4], %s242
      %246 = dma.smem_to_hbm [#allocation5], 16, %s3, [#allocation4]
    $region25: #{tpu_custom_call.1} parent=1 // pred_fallthru
      _
    // Predicated region
    $region26: #{tpu_custom_call.1} parent=1 // pred_check
      _
    $region27: #{tpu_custom_call.1} parent=1 // pred_check_branch
      %248 = sbr.rel (0) target = $region29
    $region28: #{tpu_custom_call.1} parent=1 // pred_region
      %249 = dma.done [#allocation4], 16
    $region29: #{tpu_custom_call.1} parent=1 // pred_fallthru
      _
    %250 = sfence
    %251 = vsyncpa [#allocation3], 1
    %252 = vsyncpa [#allocation4], 1

</llo_original>
